<compile_context>
chip_gen: v7x
topology: tpu7x:2x2x1
jax: 0.10.0
libtpu: 0.0.40
codegen_flags: <defaults>
</compile_context>

<pallas_src>
import functools

import jax
import jax.numpy as jnp
import numpy as np
from jax.experimental import pallas as pl
from jax.experimental.pallas import tpu as pltpu


def _dmol_loss_kernel(params_ref, y_ref, loss_ref, *, nr_mix, num_classes,
                      log_scale_min):
    """One (batch, T-chunk) tile.

    params_ref: (1, 3*nr_mix, TT) native dtype -- [logits | means | log_scales]
    y_ref:      (1, 1, TT)        native dtype -- target in [-1, 1]
    loss_ref:   (1, 1, TT)        f32          -- per-timestep neg log-likelihood
    """
    # Static sublane slices of the native-layout block; widen to f32 in-kernel.
    logit_probs = params_ref[0, :nr_mix, :].astype(jnp.float32)          # (nr_mix, TT)
    means = params_ref[0, nr_mix:2 * nr_mix, :].astype(jnp.float32)      # (nr_mix, TT)
    log_scales = jnp.maximum(
        params_ref[0, 2 * nr_mix:, :].astype(jnp.float32), log_scale_min)
    y = y_ref[0].astype(jnp.float32)                                     # (1, TT)

    half_bin = 1.0 / (num_classes - 1)
    log_half_range = float(np.log((num_classes - 1) / 2.0))

    centered = y - means
    inv_stdv = jnp.exp(-log_scales)
    plus_in = inv_stdv * (centered + half_bin)
    min_in = inv_stdv * (centered - half_bin)
    mid_in = inv_stdv * centered

    # Share exp(-|x|) between the sigmoid and the softplus of each argument
    # (3 EUP exps instead of 6 on the critical path).
    e_p = jnp.exp(-jnp.abs(plus_in))
    e_m = jnp.exp(-jnp.abs(min_in))
    e_c = jnp.exp(-jnp.abs(mid_in))

    # sigmoid(x) = where(x >= 0, 1, e) / (1 + e), e = exp(-|x|)  (exact).
    cdf_plus = jnp.where(plus_in >= 0.0, 1.0, e_p) / (1.0 + e_p)
    cdf_min = jnp.where(min_in >= 0.0, 1.0, e_m) / (1.0 + e_m)
    cdf_delta = cdf_plus - cdf_min

    sp_p = jnp.maximum(plus_in, 0.0) + jnp.log1p(e_p)    # softplus(plus_in)
    sp_m = jnp.maximum(min_in, 0.0) + jnp.log1p(e_m)     # softplus(min_in)
    sp_c = jnp.maximum(mid_in, 0.0) + jnp.log1p(e_c)     # softplus(mid_in)

    log_cdf_plus = plus_in - sp_p                         # log sigmoid(plus_in)
    log_one_minus_cdf_min = -sp_m                         # log(1 - sigmoid(min_in))
    log_pdf_mid = mid_in - log_scales - 2.0 * sp_c

    inner_inner = jnp.where(
        cdf_delta > 1e-5,
        jnp.log(jnp.maximum(cdf_delta, 1e-12)),
        log_pdf_mid - log_half_range)
    inner = jnp.where(y > 0.999, log_one_minus_cdf_min, inner_inner)
    log_probs = jnp.where(y < -0.999, log_cdf_plus, inner)

    # log_softmax folded into the final mixture reduction:
    #   loss = lse(logits) - lse(log_probs + logits)
    lmax = jnp.max(logit_probs, axis=0, keepdims=True)
    lse_logits = lmax + jnp.log(
        jnp.sum(jnp.exp(logit_probs - lmax), axis=0, keepdims=True))

    z = log_probs + logit_probs
    zmax = jnp.max(z, axis=0, keepdims=True)
    lse_z = zmax + jnp.log(jnp.sum(jnp.exp(z - zmax), axis=0, keepdims=True))

    loss_ref[0] = lse_logits - lse_z                      # lane-dense (1, TT) store


def discretized_mix_logistic_loss_pallas(y_hat, y, *, num_classes=256,
                                         log_scale_min=-7.0, tt_max=2048):
    """y_hat: (B, 3*nr_mix, T); y: (B, T, 1) in [-1, 1].

    Returns per-position losses with shape (B, T, 1) (reduce=False).
    """
    B, C, T = y_hat.shape
    assert C % 3 == 0
    nr_mix = C // 3

    # Target is tiny (30x smaller than y_hat): moving its singleton next to the
    # batch dim is negligible traffic.  y_hat stays untouched in HBM.
    yv = y.reshape(B, 1, T)

    # T-tile: must be a multiple of 128 or the full T (last-dim constraint).
    if T <= tt_max:
        if B >= 2 or T < 256:
            tt = T                                        # single full-T block
        else:
            # B == 1: split so the grid has >= 2 steps (v7x megacore).
            tt = (((T + 1) // 2) + 127) // 128 * 128
    else:
        tt = tt_max                                       # 2048 lanes

    grid = (B, pl.cdiv(T, tt))                            # ragged tail handled by Pallas
    kern = functools.partial(_dmol_loss_kernel, nr_mix=nr_mix,
                             num_classes=num_classes,
                             log_scale_min=log_scale_min)

    losses = pl.pallas_call(
        kern,
        out_shape=jax.ShapeDtypeStruct((B, 1, T), jnp.float32),
        grid_spec=pltpu.PrefetchScalarGridSpec(
            num_scalar_prefetch=0,
            grid=grid,
            in_specs=[pl.BlockSpec((1, C, tt), lambda b, t: (b, 0, t)),
                      pl.BlockSpec((1, 1, tt), lambda b, t: (b, 0, t))],
            out_specs=pl.BlockSpec((1, 1, tt), lambda b, t: (b, 0, t)),
        ),
        compiler_params=pltpu.CompilerParams(
            dimension_semantics=("parallel", "parallel")),
    )(y_hat, yv)

    return losses.reshape(B, T, 1)


# ---- pure-JAX reference (for in-script correctness check only) -------------
def _ref_loss(y_hat, y, num_classes=256, log_scale_min=-7.0):
    B, C, T = y_hat.shape
    nr_mix = C // 3
    yh = jnp.transpose(y_hat, (0, 2, 1)).astype(jnp.float32)
    logit = yh[..., :nr_mix]
    means = yh[..., nr_mix:2 * nr_mix]
    log_scales = jnp.maximum(yh[..., 2 * nr_mix:], log_scale_min)
    yb = jnp.broadcast_to(y.astype(jnp.float32), means.shape)
    centered = yb - means
    inv_stdv = jnp.exp(-log_scales)
    plus_in = inv_stdv * (centered + 1.0 / (num_classes - 1))
    min_in = inv_stdv * (centered - 1.0 / (num_classes - 1))
    cdf_plus = jax.nn.sigmoid(plus_in)
    cdf_min = jax.nn.sigmoid(min_in)
    log_cdf_plus = plus_in - jax.nn.softplus(plus_in)
    log_one_minus_cdf_min = -jax.nn.softplus(min_in)
    cdf_delta = cdf_plus - cdf_min
    mid_in = inv_stdv * centered
    log_pdf_mid = mid_in - log_scales - 2.0 * jax.nn.softplus(mid_in)
    iic = (cdf_delta > 1e-5).astype(jnp.float32)
    iio = iic * jnp.log(jnp.maximum(cdf_delta, 1e-12)) + \
        (1.0 - iic) * (log_pdf_mid - np.log((num_classes - 1) / 2.0))
    ic = (yb > 0.999).astype(jnp.float32)
    io = ic * log_one_minus_cdf_min + (1.0 - ic) * iio
    c = (yb < -0.999).astype(jnp.float32)
    lp = c * log_cdf_plus + (1.0 - c) * io
    lp = lp + jax.nn.log_softmax(logit, axis=-1)
    losses = -jax.nn.logsumexp(lp, axis=-1, keepdims=True)
    return jnp.mean(losses)


class Config:
    class model:
        quantize_channels = 256


class DiscretizedMixturelogisticLoss:
    """JAX/Pallas port of the PyTorch module (no learnable parameters)."""

    def __init__(self, config):
        self.config = config

    def forward(self, input, target, log_scale_min=-7.0):
        losses = discretized_mix_logistic_loss_pallas(
            input, target,
            num_classes=self.config.model.quantize_channels,
            log_scale_min=log_scale_min)
        assert losses.shape == target.shape          # mirrors the torch assert
        return jnp.mean(losses)

    __call__ = forward


if __name__ == "__main__":
    cfg = Config()
    loss_mod = DiscretizedMixturelogisticLoss(cfg)
    key = jax.random.PRNGKey(0)
    k1, k2, k3, k4, k5, k6 = jax.random.split(key, 6)
    nr_mix = 10                                       # C = 3*nr_mix = 30

    # 1) Small-shape check (full-T block, no ragged tail).
    B, T = 2, 16
    y_hat = jax.random.normal(k1, (B, 3 * nr_mix, T), dtype=jnp.float32)
    target = jax.random.uniform(k2, (B, T, 1), dtype=jnp.float32,
                                minval=-1.0, maxval=1.0)
    out = jax.block_until_ready(loss_mod(y_hat, target))
    ref = jax.block_until_ready(_ref_loss(y_hat, target))
    np.testing.assert_allclose(np.asarray(out), np.asarray(ref),
                               rtol=1e-5, atol=1e-5)

    # 2) Multi-chunk + ragged tail path (T % tt != 0), small tt_max to force it.
    B2, T2 = 2, 300
    y_hat2 = jax.random.normal(k3, (B2, 3 * nr_mix, T2), dtype=jnp.float32)
    target2 = jax.random.uniform(k4, (B2, T2, 1), dtype=jnp.float32,
                                 minval=-1.0, maxval=1.0)
    losses2 = discretized_mix_logistic_loss_pallas(
        y_hat2, target2, num_classes=cfg.model.quantize_channels, tt_max=128)
    out2 = jax.block_until_ready(jnp.mean(losses2))
    ref2 = jax.block_until_ready(_ref_loss(y_hat2, target2))
    np.testing.assert_allclose(np.asarray(out2), np.asarray(ref2),
                               rtol=1e-5, atol=1e-5)

    # 3) B == 1 short-T path (grid split so both v7x TCs get work) via module.
    B3, T3 = 1, 400
    y_hat3 = jax.random.normal(k5, (B3, 3 * nr_mix, T3), dtype=jnp.float32)
    target3 = jax.random.uniform(k6, (B3, T3, 1), dtype=jnp.float32,
                                 minval=-1.0, maxval=1.0)
    out3 = jax.block_until_ready(loss_mod(y_hat3, target3))
    ref3 = jax.block_until_ready(_ref_loss(y_hat3, target3))
    np.testing.assert_allclose(np.asarray(out3), np.asarray(ref3),
                               rtol=1e-5, atol=1e-5)

    print("KERNEL_OK")
</pallas_src>

<mosaic_0001>
module attributes {stable_mosaic.version = 11 : i64} {
  func.func @_dmol_loss_kernel(%arg0: i32, %arg1: i32, %arg2: memref<1x30x16xf32, #tpu.memory_space<vmem>>, %arg3: memref<1x1x16xf32, #tpu.memory_space<vmem>>, %arg4: memref<1x1x16xf32, #tpu.memory_space<vmem>>) attributes {dimension_semantics = [#tpu.dimension_semantics<parallel>, #tpu.dimension_semantics<parallel>], iteration_bounds = array<i64: 2, 1>, scalar_prefetch = 0 : i64, scratch_operands = 0 : i64, tpu.core_type = #tpu.core_type<tc>, window_params = [{transform_indices = @transform_0, window_bounds = array<i64: 1, 30, 16>}, {transform_indices = @transform_1, window_bounds = array<i64: 1, 1, 16>}, {transform_indices = @transform_2, window_bounds = array<i64: 1, 1, 16>}]} {
    %c0 = arith.constant 0 : index
    %c0_0 = arith.constant 0 : index
    %c0_1 = arith.constant 0 : index
    %0 = vector.load %arg2[%c0, %c0_0, %c0_1] : memref<1x30x16xf32, #tpu.memory_space<vmem>>, vector<1x10x16xf32>
    %1 = vector.shape_cast %0 : vector<1x10x16xf32> to vector<10x16xf32>
    %c0_2 = arith.constant 0 : index
    %c10 = arith.constant 10 : index
    %c0_3 = arith.constant 0 : index
    %2 = vector.load %arg2[%c0_2, %c10, %c0_3] : memref<1x30x16xf32, #tpu.memory_space<vmem>>, vector<1x10x16xf32>
    %3 = vector.shape_cast %2 : vector<1x10x16xf32> to vector<10x16xf32>
    %c0_4 = arith.constant 0 : index
    %c20 = arith.constant 20 : index
    %c0_5 = arith.constant 0 : index
    %4 = vector.load %arg2[%c0_4, %c20, %c0_5] : memref<1x30x16xf32, #tpu.memory_space<vmem>>, vector<1x10x16xf32>
    %5 = vector.shape_cast %4 : vector<1x10x16xf32> to vector<10x16xf32>
    %cst = arith.constant -7.000000e+00 : f32
    %6 = vector.broadcast %cst : f32 to vector<10x16xf32>
    %7 = arith.maximumf %5, %6 : vector<10x16xf32>
    %c0_6 = arith.constant 0 : index
    %c0_7 = arith.constant 0 : index
    %c0_8 = arith.constant 0 : index
    %8 = vector.load %arg3[%c0_6, %c0_7, %c0_8] : memref<1x1x16xf32, #tpu.memory_space<vmem>>, vector<1x1x16xf32>
    %9 = vector.shape_cast %8 : vector<1x1x16xf32> to vector<1x16xf32>
    %10 = vector.broadcast %9 : vector<1x16xf32> to vector<10x16xf32>
    %11 = arith.subf %10, %3 : vector<10x16xf32>
    %cst_9 = arith.constant 0.000000e+00 : f32
    %12 = vector.broadcast %cst_9 : f32 to vector<10x16xf32>
    %13 = arith.subf %12, %7 : vector<10x16xf32>
    %14 = math.exp %13 : vector<10x16xf32>
    %cst_10 = arith.constant 0.00392156886 : f32
    %15 = vector.broadcast %cst_10 : f32 to vector<10x16xf32>
    %16 = arith.addf %11, %15 : vector<10x16xf32>
    %17 = arith.mulf %14, %16 : vector<10x16xf32>
    %cst_11 = arith.constant 0.00392156886 : f32
    %18 = vector.broadcast %cst_11 : f32 to vector<10x16xf32>
    %19 = arith.subf %11, %18 : vector<10x16xf32>
    %20 = arith.mulf %14, %19 : vector<10x16xf32>
    %21 = arith.mulf %14, %11 : vector<10x16xf32>
    %22 = math.absf %17 : vector<10x16xf32>
    %cst_12 = arith.constant 0.000000e+00 : f32
    %23 = vector.broadcast %cst_12 : f32 to vector<10x16xf32>
    %24 = arith.subf %23, %22 : vector<10x16xf32>
    %25 = math.exp %24 : vector<10x16xf32>
    %26 = math.absf %20 : vector<10x16xf32>
    %cst_13 = arith.constant 0.000000e+00 : f32
    %27 = vector.broadcast %cst_13 : f32 to vector<10x16xf32>
    %28 = arith.subf %27, %26 : vector<10x16xf32>
    %29 = math.exp %28 : vector<10x16xf32>
    %30 = math.absf %21 : vector<10x16xf32>
    %cst_14 = arith.constant 0.000000e+00 : f32
    %31 = vector.broadcast %cst_14 : f32 to vector<10x16xf32>
    %32 = arith.subf %31, %30 : vector<10x16xf32>
    %33 = math.exp %32 : vector<10x16xf32>
    %cst_15 = arith.constant 0.000000e+00 : f32
    %34 = vector.broadcast %cst_15 : f32 to vector<10x16xf32>
    %35 = arith.cmpf oge, %17, %34 : vector<10x16xf32>
    %cst_16 = arith.constant 1.000000e+00 : f32
    %36 = vector.broadcast %cst_16 : f32 to vector<10x16xf32>
    %37 = arith.select %35, %36, %25 : vector<10x16xi1>, vector<10x16xf32>
    %cst_17 = arith.constant 1.000000e+00 : f32
    %38 = vector.broadcast %cst_17 : f32 to vector<10x16xf32>
    %39 = arith.addf %38, %25 : vector<10x16xf32>
    %40 = arith.divf %37, %39 : vector<10x16xf32>
    %cst_18 = arith.constant 0.000000e+00 : f32
    %41 = vector.broadcast %cst_18 : f32 to vector<10x16xf32>
    %42 = arith.cmpf oge, %20, %41 : vector<10x16xf32>
    %cst_19 = arith.constant 1.000000e+00 : f32
    %43 = vector.broadcast %cst_19 : f32 to vector<10x16xf32>
    %44 = arith.select %42, %43, %29 : vector<10x16xi1>, vector<10x16xf32>
    %cst_20 = arith.constant 1.000000e+00 : f32
    %45 = vector.broadcast %cst_20 : f32 to vector<10x16xf32>
    %46 = arith.addf %45, %29 : vector<10x16xf32>
    %47 = arith.divf %44, %46 : vector<10x16xf32>
    %48 = arith.subf %40, %47 : vector<10x16xf32>
    %cst_21 = arith.constant 0.000000e+00 : f32
    %49 = vector.broadcast %cst_21 : f32 to vector<10x16xf32>
    %50 = arith.maximumf %17, %49 : vector<10x16xf32>
    %51 = math.log1p %25 : vector<10x16xf32>
    %52 = arith.addf %50, %51 : vector<10x16xf32>
    %cst_22 = arith.constant 0.000000e+00 : f32
    %53 = vector.broadcast %cst_22 : f32 to vector<10x16xf32>
    %54 = arith.maximumf %20, %53 : vector<10x16xf32>
    %55 = math.log1p %29 : vector<10x16xf32>
    %56 = arith.addf %54, %55 : vector<10x16xf32>
    %cst_23 = arith.constant 0.000000e+00 : f32
    %57 = vector.broadcast %cst_23 : f32 to vector<10x16xf32>
    %58 = arith.maximumf %21, %57 : vector<10x16xf32>
    %59 = math.log1p %33 : vector<10x16xf32>
    %60 = arith.addf %58, %59 : vector<10x16xf32>
    %61 = arith.subf %17, %52 : vector<10x16xf32>
    %cst_24 = arith.constant 0.000000e+00 : f32
    %62 = vector.broadcast %cst_24 : f32 to vector<10x16xf32>
    %63 = arith.subf %62, %56 : vector<10x16xf32>
    %64 = arith.subf %21, %7 : vector<10x16xf32>
    %cst_25 = arith.constant 2.000000e+00 : f32
    %65 = vector.broadcast %cst_25 : f32 to vector<10x16xf32>
    %66 = arith.mulf %65, %60 : vector<10x16xf32>
    %67 = arith.subf %64, %66 : vector<10x16xf32>
    %cst_26 = arith.constant 9.99999974E-6 : f32
    %68 = vector.broadcast %cst_26 : f32 to vector<10x16xf32>
    %69 = arith.cmpf ogt, %48, %68 : vector<10x16xf32>
    %cst_27 = arith.constant 9.99999996E-13 : f32
    %70 = vector.broadcast %cst_27 : f32 to vector<10x16xf32>
    %71 = arith.maximumf %48, %70 : vector<10x16xf32>
    %72 = math.log %71 : vector<10x16xf32>
    %cst_28 = arith.constant 4.8481164 : f32
    %73 = vector.broadcast %cst_28 : f32 to vector<10x16xf32>
    %74 = arith.subf %67, %73 : vector<10x16xf32>
    %75 = arith.select %69, %72, %74 : vector<10x16xi1>, vector<10x16xf32>
    %cst_29 = arith.constant 9.990000e-01 : f32
    %76 = vector.broadcast %cst_29 : f32 to vector<1x16xf32>
    %77 = arith.cmpf ogt, %9, %76 : vector<1x16xf32>
    %78 = vector.shape_cast %77 : vector<1x16xi1> to vector<1x16xi1>
    %79 = vector.broadcast %78 : vector<1x16xi1> to vector<10x16xi1>
    %80 = arith.select %79, %63, %75 : vector<10x16xi1>, vector<10x16xf32>
    %cst_30 = arith.constant -9.990000e-01 : f32
    %81 = vector.broadcast %cst_30 : f32 to vector<1x16xf32>
    %82 = arith.cmpf olt, %9, %81 : vector<1x16xf32>
    %83 = vector.shape_cast %82 : vector<1x16xi1> to vector<1x16xi1>
    %84 = vector.broadcast %83 : vector<1x16xi1> to vector<10x16xi1>
    %85 = arith.select %84, %61, %80 : vector<10x16xi1>, vector<10x16xf32>
    %cst_31 = arith.constant dense<0xFF800000> : vector<16xf32>
    %86 = vector.multi_reduction <maximumf>, %1, %cst_31 [0] : vector<10x16xf32> to vector<16xf32>
    %87 = vector.shape_cast %86 : vector<16xf32> to vector<1x16xf32>
    %88 = vector.broadcast %87 : vector<1x16xf32> to vector<10x16xf32>
    %89 = arith.subf %1, %88 : vector<10x16xf32>
    %90 = math.exp %89 : vector<10x16xf32>
    %cst_32 = arith.constant dense<0.000000e+00> : vector<16xf32>
    %91 = vector.multi_reduction <add>, %90, %cst_32 [0] : vector<10x16xf32> to vector<16xf32>
    %92 = vector.shape_cast %91 : vector<16xf32> to vector<1x16xf32>
    %93 = math.log %92 : vector<1x16xf32>
    %94 = arith.addf %87, %93 : vector<1x16xf32>
    %95 = arith.addf %85, %1 : vector<10x16xf32>
    %cst_33 = arith.constant dense<0xFF800000> : vector<16xf32>
    %96 = vector.multi_reduction <maximumf>, %95, %cst_33 [0] : vector<10x16xf32> to vector<16xf32>
    %97 = vector.shape_cast %96 : vector<16xf32> to vector<1x16xf32>
    %98 = vector.broadcast %97 : vector<1x16xf32> to vector<10x16xf32>
    %99 = arith.subf %95, %98 : vector<10x16xf32>
    %100 = math.exp %99 : vector<10x16xf32>
    %cst_34 = arith.constant dense<0.000000e+00> : vector<16xf32>
    %101 = vector.multi_reduction <add>, %100, %cst_34 [0] : vector<10x16xf32> to vector<16xf32>
    %102 = vector.shape_cast %101 : vector<16xf32> to vector<1x16xf32>
    %103 = math.log %102 : vector<1x16xf32>
    %104 = arith.addf %97, %103 : vector<1x16xf32>
    %105 = arith.subf %94, %104 : vector<1x16xf32>
    %c0_35 = arith.constant 0 : index
    %c0_36 = arith.constant 0 : index
    %c0_37 = arith.constant 0 : index
    %106 = vector.load %arg4[%c0_35, %c0_36, %c0_37] : memref<1x1x16xf32, #tpu.memory_space<vmem>>, vector<1x1x16xf32>
    %107 = vector.shape_cast %106 : vector<1x1x16xf32> to vector<1x16xf32>
    %108 = vector.shape_cast %105 : vector<1x16xf32> to vector<1x1x16xf32>
    tpu.vector_store %arg4[%c0_35, %c0_36, %c0_37], %108 {strides = array<i32>} : memref<1x1x16xf32, #tpu.memory_space<vmem>>, vector<1x1x16xf32>,
    return
  }
  func.func @transform_0(%arg0: i32, %arg1: i32) -> (i32, i32, i32) {
    %c0_i32 = arith.constant 0 : i32
    %c0_i32_0 = arith.constant 0 : i32
    return %arg0, %c0_i32, %arg1 : i32, i32, i32
  }
  func.func @transform_1(%arg0: i32, %arg1: i32) -> (i32, i32, i32) {
    %c0_i32 = arith.constant 0 : i32
    %c0_i32_0 = arith.constant 0 : i32
    return %arg0, %c0_i32, %arg1 : i32, i32, i32
  }
  func.func @transform_2(%arg0: i32, %arg1: i32) -> (i32, i32, i32) {
    %c0_i32 = arith.constant 0 : i32
    %c0_i32_0 = arith.constant 0 : i32
    return %arg0, %c0_i32, %arg1 : i32, i32, i32
  }
}

</mosaic_0001>

<llo_original>
// kernel: tpu_custom_call.1
$region0: #{tpu_custom_call.1}
  #allocation0 [shape = 'u32[]', space=smem, size = 0x4, offset = 0x4, fixed_abs, tag = 'smem constant byte address 0x4 - core index']
  #allocation1 [shape = 'u32[144,128]{1,0:T(1,128)}', space=vmem, size = 0x12000, scoped, tag = 'internal scratch']
  %s0 = inlined_call_operand.vmem [shape: f32[2,30,16], index: 0, kind: input, shape index: {}]
  %s1 = inlined_call_operand.vmem [shape: f32[2,1,16], index: 1, kind: input, shape index: {}]
  %s2 = inlined_call_operand.hbm [shape: f32[2,1,16], index: 2, kind: output, shape index: {}]
  %s3 = sld [smem:[#allocation0]]
  $region41: #{tpu_custom_call.1} parent=0
    _
  %s5 = ssub.s32 1, %s3
  %s6 = scalar_select 0, %s5, %s3
  $region1: #{tpu_custom_call.1} parent=0
    #allocation2 [shape = 'u8[1024]{0}', space=vmem, size = 0x400, scoped, tag = 'output window, operand 0']
    #allocation3 [shape = 's32[2]{0}', space=sflag, size = 0x8, scoped, tag = 'scoped memory for tpu_custom_call.1']
    %7 = vsyncpa [#allocation3], 0
    %s8 = scalar_lea.sflag [#allocation3], 1
    %9 = vsyncpa %s8, 0
    loop: start=0, step=1, limit=4
    $region2: #{tpu_custom_call.1} parent=1 // loop_pre_header
      _
    $region3: #{tpu_custom_call.1} parent=1 // loop_header
      %s11 = sphi 0, %s15
      %p12 = scmp.ge.s32.totalorder %s11, 4
      %s18 = sphi 0, %s30
      %s19 = sphi 0, %s26
      %s20 = sphi 0, %s18
      %s21 = sphi 0, %s19
      %s22 = sphi 0, %s20
      %s23 = sphi 0, %s21
      %s35 = sphi 0, %s37
      %s38 = sphi 0, %s35
      %s39 = sphi 0, %s38
      %s55 = sphi 0, %s39
      %s63 = sphi 0, %s65
      %s66 = sphi 0, %s63
      %s67 = sphi 0, %s66
      %s83 = sphi 0, %s67
      %s91 = sphi 0, %s93
      %s94 = sphi 0, %s91
      %s95 = sphi 0, %s94
      %s111 = sphi 0, %s95
    $region4: #{tpu_custom_call.1} parent=1 // loop_header_branch
      %14 = sbr.rel (%p12) target = $region8
    $region5: #{tpu_custom_call.1} parent=1 // loop_body
      %s16 = ssub.s32 %s11, 1
      %s17 = ssub.s32 %s11, 2
      %s24 = sadd.s32 1, %s19
      %p25 = scmp.ge.s32.totalorder %s24, 1
      %s26 = scalar_select %p25, 0, %s24
      %s27 = sadd.s32 1, %s18
      %s28 = scalar_select %p25, %s27, %s18
      %p29 = scmp.ge.s32.totalorder %s28, 2
      %s30 = scalar_select %p29, 0, %s28
      %s31 = ssub.s32 %s18, %s30
      %s32 = ssub.s32 %s19, %s26
      %s33 = sor.u32 %s31, %s32
      %p34 = scmp.eq.s32.totalorder %s33, 0
      %s36 = sadd.s32 %s35, 1
      %s37 = scalar_select %p34, %s35, %s36
      %p40 = pneg %p34
      %p41 = scmp.eq.s32.totalorder %s11, 1
      %p42 = por %p40, %p41
      %p43 = scmp.ne.s32.totalorder %s35, %s38
      %p44 = scmp.eq.s32.totalorder %s11, 0
      %p45 = por %p43, %p44
      %p46 = scmp.ne.s32.totalorder %s35, %s38
      %p47 = scmp.eq.s32.totalorder %s16, 1
      %p48 = por %p46, %p47
      %p49 = scmp.ne.s32.totalorder %s38, %s39
      %p50 = scmp.eq.s32.totalorder %s16, 0
      %p51 = por %p49, %p50
      %p52 = scmp.ne.s32.totalorder %s38, %s39
      %p53 = scmp.eq.s32.totalorder %s17, 1
      %p54 = por %p52, %p53
      %p56 = scmp.ne.s32.totalorder %s39, %s55
      %p57 = scmp.eq.s32.totalorder %s17, 0
      %p58 = por %p56, %p57
      %s59 = ssub.s32 %s18, %s30
      %s60 = ssub.s32 %s19, %s26
      %s61 = sor.u32 %s59, %s60
      %p62 = scmp.eq.s32.totalorder %s61, 0
      %s64 = sadd.s32 %s63, 1
      %s65 = scalar_select %p62, %s63, %s64
      %p68 = pneg %p62
      %p69 = scmp.eq.s32.totalorder %s11, 1
      %p70 = por %p68, %p69
      %p71 = scmp.ne.s32.totalorder %s63, %s66
      %p72 = scmp.eq.s32.totalorder %s11, 0
      %p73 = por %p71, %p72
      %p74 = scmp.ne.s32.totalorder %s63, %s66
      %p75 = scmp.eq.s32.totalorder %s16, 1
      %p76 = por %p74, %p75
      %p77 = scmp.ne.s32.totalorder %s66, %s67
      %p78 = scmp.eq.s32.totalorder %s16, 0
      %p79 = por %p77, %p78
      %p80 = scmp.ne.s32.totalorder %s66, %s67
      %p81 = scmp.eq.s32.totalorder %s17, 1
      %p82 = por %p80, %p81
      %p84 = scmp.ne.s32.totalorder %s67, %s83
      %p85 = scmp.eq.s32.totalorder %s17, 0
      %p86 = por %p84, %p85
      %s87 = ssub.s32 %s18, %s30
      %s88 = ssub.s32 %s19, %s26
      %s89 = sor.u32 %s87, %s88
      %p90 = scmp.eq.s32.totalorder %s89, 0
      %s92 = sadd.s32 %s91, 1
      %s93 = scalar_select %p90, %s91, %s92
      %p96 = pneg %p90
      %p97 = scmp.eq.s32.totalorder %s11, 1
      %p98 = por %p96, %p97
      %p99 = scmp.ne.s32.totalorder %s91, %s94
      %p100 = scmp.eq.s32.totalorder %s11, 0
      %p101 = por %p99, %p100
      %p102 = scmp.ne.s32.totalorder %s91, %s94
      %p103 = scmp.eq.s32.totalorder %s16, 1
      %p104 = por %p102, %p103
      %p105 = scmp.ne.s32.totalorder %s94, %s95
      %p106 = scmp.eq.s32.totalorder %s16, 0
      %p107 = por %p105, %p106
      %p108 = scmp.ne.s32.totalorder %s94, %s95
      %p109 = scmp.eq.s32.totalorder %s17, 1
      %p110 = por %p108, %p109
      %p112 = scmp.ne.s32.totalorder %s95, %s111
      %p113 = scmp.eq.s32.totalorder %s17, 0
      %p114 = por %p112, %p113
      %p115 = scmp.le.s32.totalorder 1, %s11
      %p116 = scmp.lt.s32.totalorder %s11, 3
      %p117 = pnand %p115, %p116
      %p118 = pneg %p117
      // Predicated region
      $region9: #{tpu_custom_call.1} parent=5 // pred_check
        _
      $region10: #{tpu_custom_call.1} parent=5 // pred_check_branch
        %120 = sbr.rel (%p117) target = $region12
      $region11: #{tpu_custom_call.1} parent=5 // pred_region
        %s121 = ssub.s32 %s11, 1
      $region12: #{tpu_custom_call.1} parent=5 // pred_fallthru
        _
      %p122 = scmp.lt.s32.totalorder %s11, 2
      // Predicated region
      $region13: #{tpu_custom_call.1} parent=5 // pred_check
        %p123 = pneg %p122
      $region14: #{tpu_custom_call.1} parent=5 // pred_check_branch
        %125 = sbr.rel (%p123) target = $region16
      $region15: #{tpu_custom_call.1} parent=5 // pred_region
        // Predicated region
        $region17: #{tpu_custom_call.1} parent=15 // pred_check
          %p126 = pneg %p45
        $region18: #{tpu_custom_call.1} parent=15 // pred_check_branch
          %128 = sbr.rel (%p126) target = $region20
        $region19: #{tpu_custom_call.1} parent=15 // pred_region
          %p129 = scmp.lt.s32.totalorder %s18, 1
          %s130 = scalar_select %p129, %s18, 1
          %p131 = scmp.lt.s32.totalorder %s19, 0
          %s132 = scalar_select %p131, %s19, 0
          %s133 = smul.addr %s130, 4
          %s134 = sadd.s32 %s132, %s133
          %s135 = smul.addr %s134, 8
          %s136 = scalar_lea.vmem %s0, %s135
        $region20: #{tpu_custom_call.1} parent=15 // pred_fallthru
          _
        // Predicated region
        $region21: #{tpu_custom_call.1} parent=15 // pred_check
          %p137 = pneg %p73
        $region22: #{tpu_custom_call.1} parent=15 // pred_check_branch
          %139 = sbr.rel (%p137) target = $region24
        $region23: #{tpu_custom_call.1} parent=15 // pred_region
          %p140 = scmp.lt.s32.totalorder %s18, 1
          %s141 = scalar_select %p140, %s18, 1
          %p142 = scmp.lt.s32.totalorder %s19, 0
          %s143 = scalar_select %p142, %s19, 0
          %s144 = sadd.s32 %s143, %s141
          %s145 = scalar_lea.vmem %s1, %s144
        $region24: #{tpu_custom_call.1} parent=15 // pred_fallthru
          _
      $region16: #{tpu_custom_call.1} parent=5 // pred_fallthru
        _
      %p146 = scmp.le.s32.totalorder 1, %s11
      %p147 = scmp.lt.s32.totalorder %s11, 3
      %p148 = pnand %p146, %p147
      %p149 = pneg %p148
      // Predicated region
      $region25: #{tpu_custom_call.1} parent=5 // pred_check
        _
      $region26: #{tpu_custom_call.1} parent=5 // pred_check_branch
        %151 = sbr.rel (%p148) target = $region28
      $region27: #{tpu_custom_call.1} parent=5 // pred_region
        %s152 = ssub.s32 %s11, 1
        %p153 = scmp.lt.s32.totalorder %s20, 1
        %s154 = scalar_select %p153, %s20, 1
        %p155 = scmp.lt.s32.totalorder %s21, 0
        %s156 = scalar_select %p155, %s21, 0
        %s157 = smul.addr %s154, 4
        %s158 = sadd.s32 %s156, %s157
        %s159 = smul.addr %s158, 8
        %s160 = scalar_lea.vmem %s0, %s159
        %p161 = pneg %p51
        %p162 = pneg %p48
        %p163 = scmp.lt.s32.totalorder %s20, 1
        %s164 = scalar_select %p163, %s20, 1
        %p165 = scmp.lt.s32.totalorder %s21, 0
        %s166 = scalar_select %p165, %s21, 0
        %s167 = sadd.s32 %s166, %s164
        %s168 = scalar_lea.vmem %s1, %s167
        %p169 = pneg %p79
        %p170 = pneg %p76
        %p171 = pneg %p107
        %p172 = pneg %p104
        %s173 = sand.u32 %s94, 1
        %s174 = scalar_lea.sflag [#allocation3], %s173
        %s175 = sand.u32 %s94, 1
        %s176 = scalar_lea.vmem [#allocation2], %s175
        %p177 = scmp.lt.s32.totalorder %s20, 1
        %s178 = scalar_select %p177, %s20, 1
        %p179 = scmp.lt.s32.totalorder %s21, 0
        %s180 = scalar_select %p179, %s21, 0
        %s181 = smul.addr %s178, 4
        %s182 = sadd.s32 %s180, %s181
        %s183 = smul.addr %s182, 8
        %s184 = scalar_lea.vmem %s0, %s183
        %p185 = scmp.lt.s32.totalorder %s20, 1
        %s186 = scalar_select %p185, %s20, 1
        %p187 = scmp.lt.s32.totalorder %s21, 0
        %s188 = scalar_select %p187, %s21, 0
        %s189 = sadd.s32 %s188, %s186
        %s190 = scalar_lea.vmem %s1, %s189
        %v191 = vld [vmem:[%s184] sm:$0xff]
        %v192 = vld [vmem:[%s184 + $0x8] sm:$0x3]
        %v193 = vld [vmem:[%s184 + $0xa] sm:$0xff]
        %v194 = vld [vmem:[%s184 + $0x12] sm:$0x3]
        %v195 = vld [vmem:[%s184 + $0x14] sm:$0xff]
        %v196 = vld [vmem:[%s184 + $0x1c] sm:$0x3]
        %v197 = vmax.f32 %v195, -7.0
        %v198 = vmax.f32 %v196, -7.0
        %v199 = vld [vmem:[%s190] sm:$0x1]
        %v201 = vlaneseq
        %v202 = vshrl.u32 %v201, 7
        %v203 = vsub.s32 0, %v202
        %v204 = vrot.slane %v199, %v203
        %v206 = vsub.f32 %v204, %v193
        %v207 = vsub.f32 %v204, %v194
        %v208 = vsub.f32 0.0, %v197
        %v209 = vsub.f32 0.0, %v198
        %v210 = vmul.f32 %v208, 1.442695
        %v211 = vpow.pop %v210
        %v212 = vmul.f32 %v209, 1.442695
        %v213 = vpow.pop %v212
        %v214 = vadd.f32 %v206, 0.003921569
        %v215 = vadd.f32 %v207, 0.003921569
        %v216 = vmul.f32 %v211, %v214
        %v217 = vmul.f32 %v213, %v215
        %v218 = vsub.f32 %v206, 0.003921569
        %v219 = vsub.f32 %v207, 0.003921569
        %v220 = vmul.f32 %v211, %v218
        %v221 = vmul.f32 %v213, %v219
        %v222 = vmul.f32 %v211, %v206
        %v223 = vmul.f32 %v213, %v207
        %v224 = vand.u32 2147483647, %v216
        %v225 = vand.u32 2147483647, %v217
        %v226 = vsub.f32 0.0, %v224
        %v227 = vsub.f32 0.0, %v225
        %v228 = vmul.f32 %v226, 1.442695
        %v229 = vpow.pop %v228
        %v230 = vmul.f32 %v227, 1.442695
        %v231 = vpow.pop %v230
        %v232 = vand.u32 2147483647, %v220
        %v233 = vand.u32 2147483647, %v221
        %v234 = vsub.f32 0.0, %v232
        %v235 = vsub.f32 0.0, %v233
        %v236 = vmul.f32 %v234, 1.442695
        %v237 = vpow.pop %v236
        %v238 = vmul.f32 %v235, 1.442695
        %v239 = vpow.pop %v238
        %v240 = vand.u32 2147483647, %v222
        %v241 = vand.u32 2147483647, %v223
        %v242 = vsub.f32 0.0, %v240
        %v243 = vsub.f32 0.0, %v241
        %v244 = vmul.f32 %v242, 1.442695
        %v245 = vpow.pop %v244
        %v246 = vmul.f32 %v243, 1.442695
        %v247 = vpow.pop %v246
        %vm248 = vcmp.ge.f32.partialorder %v216, 0.0
        %vm249 = vcmp.ge.f32.partialorder %v217, 0.0
        %v250 = vsel %vm248, 1.0, %v229
        %v251 = vsel %vm249, 1.0, %v231
        %v252 = vadd.f32 %v229, 1.0
        %v253 = vadd.f32 %v231, 1.0
        %v254 = vrcp.pop %v252
        %v255 = vmul.f32 %v250, %v254
        %v256 = vrcp.pop %v253
        %v257 = vmul.f32 %v251, %v256
        %vm258 = vcmp.ge.f32.partialorder %v220, 0.0
        %vm259 = vcmp.ge.f32.partialorder %v221, 0.0
        %v260 = vsel %vm258, 1.0, %v237
        %v261 = vsel %vm259, 1.0, %v239
        %v262 = vadd.f32 %v237, 1.0
        %v263 = vadd.f32 %v239, 1.0
        %v264 = vrcp.pop %v262
        %v265 = vmul.f32 %v260, %v264
        %v266 = vrcp.pop %v263
        %v267 = vmul.f32 %v261, %v266
        %v268 = vsub.f32 %v255, %v265
        %v269 = vsub.f32 %v257, %v267
        %v270 = vmax.f32 %v216, 0.0
        %v271 = vmax.f32 %v217, 0.0
        %v272 = vadd.f32 %v229, 1.0
        %v273 = vlog2.pop %v272
        %v274 = vmul.f32 %v273, 0.6931472
        %v275 = vmul.f32 -0.5, %v229
        %v276 = vadd.f32 %v275, 1.0
        %v277 = vmul.f32 %v276, %v229
        %v278 = vand.u32 2147483647, %v229
        %vm279 = vcmp.lt.f32.partialorder %v278, 0.0004427343
        %v280 = vsel %vm279, %v277, %v274
        %v281 = vadd.f32 %v231, 1.0
        %v282 = vlog2.pop %v281
        %v283 = vmul.f32 %v282, 0.6931472
        %v284 = vmul.f32 -0.5, %v231
        %v285 = vadd.f32 %v284, 1.0
        %v286 = vmul.f32 %v285, %v231
        %v287 = vand.u32 2147483647, %v231
        %vm288 = vcmp.lt.f32.partialorder %v287, 0.0004427343
        %v289 = vsel %vm288, %v286, %v283
        %v290 = vadd.f32 %v270, %v280
        %v291 = vadd.f32 %v271, %v289
        %v292 = vmax.f32 %v220, 0.0
        %v293 = vmax.f32 %v221, 0.0
        %v294 = vadd.f32 %v237, 1.0
        %v295 = vlog2.pop %v294
        %v296 = vmul.f32 %v295, 0.6931472
        %v297 = vmul.f32 -0.5, %v237
        %v298 = vadd.f32 %v297, 1.0
        %v299 = vmul.f32 %v298, %v237
        %v300 = vand.u32 2147483647, %v237
        %vm301 = vcmp.lt.f32.partialorder %v300, 0.0004427343
        %v302 = vsel %vm301, %v299, %v296
        %v303 = vadd.f32 %v239, 1.0
        %v304 = vlog2.pop %v303
        %v305 = vmul.f32 %v304, 0.6931472
        %v306 = vmul.f32 -0.5, %v239
        %v307 = vadd.f32 %v306, 1.0
        %v308 = vmul.f32 %v307, %v239
        %v309 = vand.u32 2147483647, %v239
        %vm310 = vcmp.lt.f32.partialorder %v309, 0.0004427343
        %v311 = vsel %vm310, %v308, %v305
        %v312 = vadd.f32 %v292, %v302
        %v313 = vadd.f32 %v293, %v311
        %v314 = vmax.f32 %v222, 0.0
        %v315 = vmax.f32 %v223, 0.0
        %v316 = vadd.f32 %v245, 1.0
        %v317 = vlog2.pop %v316
        %v318 = vmul.f32 %v317, 0.6931472
        %v319 = vmul.f32 -0.5, %v245
        %v320 = vadd.f32 %v319, 1.0
        %v321 = vmul.f32 %v320, %v245
        %v322 = vand.u32 2147483647, %v245
        %vm323 = vcmp.lt.f32.partialorder %v322, 0.0004427343
        %v324 = vsel %vm323, %v321, %v318
        %v325 = vadd.f32 %v247, 1.0
        %v326 = vlog2.pop %v325
        %v327 = vmul.f32 %v326, 0.6931472
        %v328 = vmul.f32 -0.5, %v247
        %v329 = vadd.f32 %v328, 1.0
        %v330 = vmul.f32 %v329, %v247
        %v331 = vand.u32 2147483647, %v247
        %vm332 = vcmp.lt.f32.partialorder %v331, 0.0004427343
        %v333 = vsel %vm332, %v330, %v327
        %v334 = vadd.f32 %v314, %v324
        %v335 = vadd.f32 %v315, %v333
        %v336 = vsub.f32 %v216, %v290
        %v337 = vsub.f32 %v217, %v291
        %v338 = vsub.f32 0.0, %v312
        %v339 = vsub.f32 0.0, %v313
        %v340 = vsub.f32 %v222, %v197
        %v341 = vsub.f32 %v223, %v198
        %v342 = vmul.f32 %v334, 2.0
        %v343 = vmul.f32 %v335, 2.0
        %v344 = vsub.f32 %v340, %v342
        %v345 = vsub.f32 %v341, %v343
        %vm346 = vcmp.gt.f32.partialorder %v268, 1e-05
        %vm347 = vcmp.gt.f32.partialorder %v269, 1e-05
        %v348 = vmax.f32 %v268, 1e-12
        %v349 = vmax.f32 %v269, 1e-12
        %v350 = vlog2.pop %v348
        %v351 = vmul.f32 %v350, 0.6931472
        %v352 = vlog2.pop %v349
        %v353 = vmul.f32 %v352, 0.6931472
        %v354 = vsub.f32 %v344, 4.8481164
        %v355 = vsub.f32 %v345, 4.8481164
        %v356 = vsel %vm346, %v351, %v354
        %v357 = vsel %vm347, %v353, %v355
        %vm358 = vcmp.gt.f32.partialorder %v199, 0.999
        %v359 = vsel %vm358, 1, 0
        %v360 = vlaneseq
        %v361 = vshrl.u32 %v360, 7
        %v362 = vsub.s32 0, %v361
        %v363 = vrot.slane %v359, %v362
        %vm364 = vcmp.eq.s32.totalorder %v363, 1
        %v365 = vsel %vm364, %v338, %v356
        %v366 = vsel %vm364, %v339, %v357
        %vm367 = vcmp.lt.f32.partialorder %v199, -0.999
        %v368 = vsel %vm367, 1, 0
        %v369 = vlaneseq
        %v370 = vshrl.u32 %v369, 7
        %v371 = vsub.s32 0, %v370
        %v372 = vrot.slane %v368, %v371
        %vm373 = vcmp.eq.s32.totalorder %v372, 1
        %v374 = vsel %vm373, %v336, %v365
        %v375 = vsel %vm373, %v337, %v366
        %vm376 = vcmask 130048
        %v377 = vsel %vm376, %v191, -inf
        %vm378 = vcmask 123904
        %v379 = vsel %vm378, %v192, -inf
        %v380 = vmax.f32 %v377, %v379
        %v381 = vrot.slane %v380, 4
        %v382 = vmax.f32 %v380, %v381
        %v383 = vrot.slane %v382, 2
        %v384 = vmax.f32 %v382, %v383
        %v385 = vrot.slane %v384, 1
        %v386 = vmax.f32 %v384, %v385
        %v387 = vsub.f32 %v191, %v386
        %v388 = vsub.f32 %v192, %v386
        %v389 = vmul.f32 %v387, 1.442695
        %v390 = vpow.pop %v389
        %v391 = vmul.f32 %v388, 1.442695
        %v392 = vpow.pop %v391
        %v393 = vsel %vm376, %v390, 0.0
        %v394 = vsel %vm378, %v392, 0.0
        %v395 = vadd.f32 %v393, %v394
        %v396 = vrot.slane %v395, 4
        %v397 = vadd.f32 %v395, %v396
        %v398 = vrot.slane %v397, 2
        %v399 = vadd.f32 %v397, %v398
        %v400 = vrot.slane %v399, 1
        %v401 = vadd.f32 %v399, %v400
        %v402 = vlog2.pop %v401
        %v403 = vmul.f32 %v402, 0.6931472
        %v404 = vadd.f32 %v386, %v403
        %v405 = vadd.f32 %v374, %v191
        %v406 = vadd.f32 %v375, %v192
        %v407 = vsel %vm376, %v405, -inf
        %v408 = vsel %vm378, %v406, -inf
        %v409 = vmax.f32 %v407, %v408
        %v410 = vrot.slane %v409, 4
        %v411 = vmax.f32 %v409, %v410
        %v412 = vrot.slane %v411, 2
        %v413 = vmax.f32 %v411, %v412
        %v414 = vrot.slane %v413, 1
        %v415 = vmax.f32 %v413, %v414
        %v416 = vsub.f32 %v405, %v415
        %v417 = vsub.f32 %v406, %v415
        %v418 = vmul.f32 %v416, 1.442695
        %v419 = vpow.pop %v418
        %v420 = vmul.f32 %v417, 1.442695
        %v421 = vpow.pop %v420
        %v422 = vsel %vm376, %v419, 0.0
        %v423 = vsel %vm378, %v421, 0.0
        %v424 = vadd.f32 %v422, %v423
        %v425 = vrot.slane %v424, 4
        %v426 = vadd.f32 %v424, %v425
        %v427 = vrot.slane %v426, 2
        %v428 = vadd.f32 %v426, %v427
        %v429 = vrot.slane %v428, 1
        %v430 = vadd.f32 %v428, %v429
        %v431 = vlog2.pop %v430
        %v432 = vmul.f32 %v431, 0.6931472
        %v433 = vadd.f32 %v415, %v432
        %v434 = vsub.f32 %v404, %v433
        %vm435 = vcmask 122880
        %436 = vst.msk [vmem:[%s176] sm:$0x1] %vm435, %v434
        %s437 = sand.u32 %s94, 1
        %s438 = scalar_lea.sflag [#allocation3], %s437
        %s439 = sand.u32 %s94, 1
        %s440 = scalar_lea.vmem [#allocation2], %s439
        // Predicated region
        $region29: #{tpu_custom_call.1} parent=27 // pred_check
          %p441 = pneg %p104
        $region30: #{tpu_custom_call.1} parent=27 // pred_check_branch
          %443 = sbr.rel (%p441) target = $region32
        $region31: #{tpu_custom_call.1} parent=27 // pred_region
          %s445 = ssub.s32 16, 16
          %446 = vsyncadd %s438, %s445
          %s447 = sadd.s32 %s21, %s20
          %s448 = smul.addr %s447, 16
          %s449 = scalar_lea.hbm %s2, %s448
          %s451 = sshll.u32 %s440, 4
          %s452 = int_to_ptr.vmem [resolvable:$true] %s451
          %454 = dma.vmem_to_hbm [thread:$0]  %s452, 16, %s449, %s438
        $region32: #{tpu_custom_call.1} parent=27 // pred_fallthru
          _
      $region28: #{tpu_custom_call.1} parent=5 // pred_fallthru
        _
      %p455 = scmp.le.s32.totalorder 2, %s11
      // Predicated region
      $region33: #{tpu_custom_call.1} parent=5 // pred_check
        %p456 = pneg %p455
      $region34: #{tpu_custom_call.1} parent=5 // pred_check_branch
        %458 = sbr.rel (%p456) target = $region36
      $region35: #{tpu_custom_call.1} parent=5 // pred_region
        %s459 = ssub.s32 %s11, 2
        // Predicated region
        $region37: #{tpu_custom_call.1} parent=35 // pred_check
          %p460 = pneg %p110
        $region38: #{tpu_custom_call.1} parent=35 // pred_check_branch
          %462 = sbr.rel (%p460) target = $region40
        $region39: #{tpu_custom_call.1} parent=35 // pred_region
          %s463 = sand.u32 %s95, 1
          %s464 = scalar_lea.sflag [#allocation3], %s463
          %s465 = sand.u32 %s95, 1
          %s466 = scalar_lea.vmem [#allocation2], %s465
          %467 = dma.done %s464, 16
        $region40: #{tpu_custom_call.1} parent=35 // pred_fallthru
          _
      $region36: #{tpu_custom_call.1} parent=5 // pred_fallthru
        _
    $region6: #{tpu_custom_call.1} parent=1 // loop_footer
      %s15 = sadd.s32 1, %s11
    $region7: #{tpu_custom_call.1} parent=1 // loop_footer_branch
      %10 = sbr.rel target = $region3
    $region8: #{tpu_custom_call.1} parent=1 // loop_exit
      _
    %468 = vsyncpa [#allocation3], 1
    %s469 = scalar_lea.sflag [#allocation3], 1
    %470 = vsyncpa %s469, 1

</llo_original>
